<compile_context>
chip_gen: v6e
topology: v6e:2x2x1
jax: 0.10.0
libtpu: 0.0.40
codegen_flags: <defaults>
</compile_context>

<pallas_src>
import numpy as np
import jax
import jax.numpy as jnp
from jax.experimental import pallas as pl
from jax.experimental.pallas import tpu as pltpu


# ------------------------------------------------------------------ kernel ---

def _make_kernel(num_modalities):
    """Kernel factory: per-modality encoder MLPs + K-split classifier, no concat."""
    M = num_modalities

    def kernel(*refs):
        x_refs = refs[:M]
        out_ref = refs[-1]
        p = refs[M:-1]
        acc = None
        for m in range(M):
            w1, b1, w2, b2, wc1 = p[5 * m:5 * m + 5]
            # encoder: Linear -> ReLU -> Dropout(identity) -> Linear
            h = jnp.maximum(
                jnp.dot(x_refs[m][...], w1[...],
                        preferred_element_type=jnp.float32) + b1[...], 0.0)
            # TODO(synk): dropout treated as identity (eval mode); training-mode dropout
            # would need pltpu.prng_seed / pltpu.prng_random_bits masking here and below.
            f = jnp.dot(h, w2[...], preferred_element_type=jnp.float32) + b2[...]
            # classifier head, K-split over the (never-materialized) concat:
            #   relu(f_m) @ Wc1[rows of modality m]
            z = jnp.maximum(f, 0.0)
            part = jnp.dot(z, wc1[...], preferred_element_type=jnp.float32)
            acc = part if acc is None else acc + part
        bc1, wc2_row, bc2 = p[5 * M:5 * M + 3]
        c = jnp.maximum(acc + bc1[...], 0.0)                     # (tb, hidden)
        # final Linear(hidden, 1), lane-packed: (1, hidden) @ (hidden, tb) -> (1, tb)
        y = jnp.dot(wc2_row[...], c.T, preferred_element_type=jnp.float32)
        out_ref[...] = y + bc2[...]                              # (1, tb) + (1, 1)

    return kernel


# --------------------------------------------------------------- packing ----

def pack_params(params, input_dims, hidden_dim, encoded_dim):
    """Flat operand list: per modality [W1, b1, W2, b2, Wc1_rows_m], then
    [bc1, Wc2^T (1, hidden), bc2 (1, 1)]."""
    M = len(input_dims)
    ops = []
    for m in range(M):
        wc1_m = params["cls_w1"][m * encoded_dim:(m + 1) * encoded_dim, :]
        ops += [params["enc_w1"][m], params["enc_b1"][m],
                params["enc_w2"][m], params["enc_b2"][m], wc1_m]
    ops += [params["cls_b1"], params["cls_w2"].T, params["cls_b2"]]
    return ops


def _choose_batch_tiling(batch, max_tb=2048):
    """Return (tb, padded_batch). tb is lane/sublane friendly whenever multi-step."""
    if batch <= max_tb:
        if batch >= 1024 and batch % 256 == 0:
            return batch // 2, batch        # >=2 grid steps (v7x megacore), tb % 128 == 0
        return batch, batch                 # single full-extent block
    padded = pl.cdiv(batch, max_tb) * max_tb
    return max_tb, padded


# ---------------------------------------------------------------- wrapper ---

def intermediate_integration_forward(inputs, params, input_dims, hidden_dim,
                                     encoded_dim):
    """inputs: list of (B, in_dim_m) float32 arrays."""
    M = len(inputs)
    B = inputs[0].shape[0]
    tb, b_pad = _choose_batch_tiling(B)
    xs = [jnp.pad(x, ((0, b_pad - B), (0, 0))) if b_pad > B else x for x in inputs]

    weights = pack_params(params, input_dims, hidden_dim, encoded_dim)

    # Activations stream over the batch grid; weights/biases are VMEM-resident
    # (constant block index).  Note: could shrink their buffering with
    # pipeline_mode=pl.Buffered(1); left at the default for robustness.
    in_specs = [pl.BlockSpec((tb, x.shape[1]), lambda i: (i, 0)) for x in xs]
    for w in weights:
        in_specs.append(pl.BlockSpec(w.shape, lambda i: (0, 0)))
    out_spec = pl.BlockSpec((1, tb), lambda i: (0, i))

    E = encoded_dim
    H = hidden_dim
    flops_per_row = 2 * (sum(input_dims) * H + M * H * E + M * E * H + H * 1)
    bytes_accessed = (sum(x.nbytes for x in xs)
                      + sum(w.nbytes for w in weights)
                      + b_pad * 4)
    cost = pl.CostEstimate(flops=flops_per_row * b_pad, transcendentals=0,
                           bytes_accessed=bytes_accessed)

    out = pl.pallas_call(
        _make_kernel(M),
        out_shape=jax.ShapeDtypeStruct((1, b_pad), jnp.float32),
        grid=(b_pad // tb,),
        in_specs=in_specs,
        out_specs=out_spec,
        compiler_params=pltpu.CompilerParams(
            dimension_semantics=("parallel",),
            vmem_limit_bytes=32 * 1024 * 1024),
        cost_estimate=cost,
    )(*xs, *weights)

    return out[0, :B]   # (B,) == .squeeze(-1) of the (B, 1) logits


# ------------------------------------------------------------ param setup ---

def _init_linear(key, in_dim, out_dim):
    """Deterministic PyTorch-style Linear init, stored as (in, out) / (1, out)."""
    k_w, k_b = jax.random.split(key)
    bound = 1.0 / np.sqrt(in_dim)
    w = jax.random.uniform(k_w, (in_dim, out_dim), jnp.float32, -bound, bound)
    b = jax.random.uniform(k_b, (1, out_dim), jnp.float32, -bound, bound)
    return w, b


def init_params(key, input_dims, hidden_dim, encoded_dim):
    params = {"enc_w1": [], "enc_b1": [], "enc_w2": [], "enc_b2": []}
    keys = jax.random.split(key, 2 * len(input_dims) + 2)
    for m, in_dim in enumerate(input_dims):
        w1, b1 = _init_linear(keys[2 * m], in_dim, hidden_dim)
        w2, b2 = _init_linear(keys[2 * m + 1], hidden_dim, encoded_dim)
        params["enc_w1"].append(w1)
        params["enc_b1"].append(b1)
        params["enc_w2"].append(w2)
        params["enc_b2"].append(b2)
    params["cls_w1"], params["cls_b1"] = _init_linear(
        keys[-2], len(input_dims) * encoded_dim, hidden_dim)
    params["cls_w2"], params["cls_b2"] = _init_linear(keys[-1], hidden_dim, 1)
    return params


# --------------------------------------------------------------- reference ---

def reference_forward(inputs, params):
    feats = []
    for m, x in enumerate(inputs):
        h = jnp.maximum(x @ params["enc_w1"][m] + params["enc_b1"][m], 0.0)
        feats.append(h @ params["enc_w2"][m] + params["enc_b2"][m])
    combined = jnp.concatenate(feats, axis=-1)
    z = jnp.maximum(combined, 0.0)
    z = jnp.maximum(z @ params["cls_w1"] + params["cls_b1"], 0.0)
    out = z @ params["cls_w2"] + params["cls_b2"]
    return out[:, 0]


# -------------------------------------------------------------------- main ---

if __name__ == "__main__":
    input_dims = (16, 32)        # two modalities
    hidden_dim = 32
    encoded_dim = 16
    batch = 8

    key = jax.random.PRNGKey(0)
    k_params, k_x0, k_x1 = jax.random.split(key, 3)

    params = init_params(k_params, input_dims, hidden_dim, encoded_dim)
    inputs = [
        jax.random.normal(k_x0, (batch, input_dims[0]), jnp.float32),
        jax.random.normal(k_x1, (batch, input_dims[1]), jnp.float32),
    ]

    out = intermediate_integration_forward(inputs, params, input_dims,
                                           hidden_dim, encoded_dim)
    out = jax.block_until_ready(out)

    ref = reference_forward(inputs, params)
    assert out.shape == (batch,), out.shape
    np.testing.assert_allclose(np.asarray(out), np.asarray(ref),
                               rtol=1e-5, atol=1e-5)
    print("KERNEL_OK")
</pallas_src>

<mosaic_0001>
module attributes {stable_mosaic.version = 11 : i64} {
  func.func @kernel(%arg0: i32, %arg1: memref<8x16xf32, #tpu.memory_space<vmem>>, %arg2: memref<8x32xf32, #tpu.memory_space<vmem>>, %arg3: memref<16x32xf32, #tpu.memory_space<vmem>>, %arg4: memref<1x32xf32, #tpu.memory_space<vmem>>, %arg5: memref<32x16xf32, #tpu.memory_space<vmem>>, %arg6: memref<1x16xf32, #tpu.memory_space<vmem>>, %arg7: memref<16x32xf32, #tpu.memory_space<vmem>>, %arg8: memref<32x32xf32, #tpu.memory_space<vmem>>, %arg9: memref<1x32xf32, #tpu.memory_space<vmem>>, %arg10: memref<32x16xf32, #tpu.memory_space<vmem>>, %arg11: memref<1x16xf32, #tpu.memory_space<vmem>>, %arg12: memref<16x32xf32, #tpu.memory_space<vmem>>, %arg13: memref<1x32xf32, #tpu.memory_space<vmem>>, %arg14: memref<1x32xf32, #tpu.memory_space<vmem>>, %arg15: memref<1x1xf32, #tpu.memory_space<vmem>>, %arg16: memref<1x8xf32, #tpu.memory_space<vmem>>) attributes {dimension_semantics = [#tpu.dimension_semantics<parallel>], iteration_bounds = array<i64: 1>, scalar_prefetch = 0 : i64, scratch_operands = 0 : i64, tpu.core_type = #tpu.core_type<tc>, window_params = [{transform_indices = @transform_0, window_bounds = array<i64: 8, 16>}, {transform_indices = @transform_1, window_bounds = array<i64: 8, 32>}, {pipeline_mode = #tpu.pipeline_mode<synchronous>, transform_indices = @transform_2, window_bounds = array<i64: 16, 32>}, {pipeline_mode = #tpu.pipeline_mode<synchronous>, transform_indices = @transform_3, window_bounds = array<i64: 1, 32>}, {pipeline_mode = #tpu.pipeline_mode<synchronous>, transform_indices = @transform_4, window_bounds = array<i64: 32, 16>}, {pipeline_mode = #tpu.pipeline_mode<synchronous>, transform_indices = @transform_5, window_bounds = array<i64: 1, 16>}, {pipeline_mode = #tpu.pipeline_mode<synchronous>, transform_indices = @transform_6, window_bounds = array<i64: 16, 32>}, {pipeline_mode = #tpu.pipeline_mode<synchronous>, transform_indices = @transform_7, window_bounds = array<i64: 32, 32>}, {pipeline_mode = #tpu.pipeline_mode<synchronous>, transform_indices = @transform_8, window_bounds = array<i64: 1, 32>}, {pipeline_mode = #tpu.pipeline_mode<synchronous>, transform_indices = @transform_9, window_bounds = array<i64: 32, 16>}, {pipeline_mode = #tpu.pipeline_mode<synchronous>, transform_indices = @transform_10, window_bounds = array<i64: 1, 16>}, {pipeline_mode = #tpu.pipeline_mode<synchronous>, transform_indices = @transform_11, window_bounds = array<i64: 16, 32>}, {pipeline_mode = #tpu.pipeline_mode<synchronous>, transform_indices = @transform_12, window_bounds = array<i64: 1, 32>}, {pipeline_mode = #tpu.pipeline_mode<synchronous>, transform_indices = @transform_13, window_bounds = array<i64: 1, 32>}, {pipeline_mode = #tpu.pipeline_mode<synchronous>, transform_indices = @transform_14, window_bounds = array<i64: 1, 1>}, {transform_indices = @transform_15, window_bounds = array<i64: 1, 8>}]} {
    %c0 = arith.constant 0 : index
    %c0_0 = arith.constant 0 : index
    %0 = vector.load %arg1[%c0, %c0_0] : memref<8x16xf32, #tpu.memory_space<vmem>>, vector<8x16xf32>
    %c0_1 = arith.constant 0 : index
    %c0_2 = arith.constant 0 : index
    %1 = vector.load %arg3[%c0_1, %c0_2] : memref<16x32xf32, #tpu.memory_space<vmem>>, vector<16x32xf32>
    %cst = arith.constant dense<0.000000e+00> : vector<8x32xf32>
    %2 = tpu.matmul %0, %1, %cst {dimension_numbers = #tpu.dot_dimension_numbers<[1], [0], [0], [1], [0, 0, 1, 1], [], []>} : vector<8x16xf32>, vector<16x32xf32>, vector<8x32xf32> -> vector<8x32xf32>
    %c0_3 = arith.constant 0 : index
    %c0_4 = arith.constant 0 : index
    %3 = vector.load %arg4[%c0_3, %c0_4] : memref<1x32xf32, #tpu.memory_space<vmem>>, vector<1x32xf32>
    %4 = vector.broadcast %3 : vector<1x32xf32> to vector<8x32xf32>
    %5 = arith.addf %2, %4 : vector<8x32xf32>
    %cst_5 = arith.constant 0.000000e+00 : f32
    %6 = vector.broadcast %cst_5 : f32 to vector<8x32xf32>
    %7 = arith.maximumf %5, %6 : vector<8x32xf32>
    %c0_6 = arith.constant 0 : index
    %c0_7 = arith.constant 0 : index
    %8 = vector.load %arg5[%c0_6, %c0_7] : memref<32x16xf32, #tpu.memory_space<vmem>>, vector<32x16xf32>
    %cst_8 = arith.constant dense<0.000000e+00> : vector<8x16xf32>
    %9 = tpu.matmul %7, %8, %cst_8 {dimension_numbers = #tpu.dot_dimension_numbers<[1], [0], [0], [1], [0, 0, 1, 1], [], []>} : vector<8x32xf32>, vector<32x16xf32>, vector<8x16xf32> -> vector<8x16xf32>
    %c0_9 = arith.constant 0 : index
    %c0_10 = arith.constant 0 : index
    %10 = vector.load %arg6[%c0_9, %c0_10] : memref<1x16xf32, #tpu.memory_space<vmem>>, vector<1x16xf32>
    %11 = vector.broadcast %10 : vector<1x16xf32> to vector<8x16xf32>
    %12 = arith.addf %9, %11 : vector<8x16xf32>
    %cst_11 = arith.constant 0.000000e+00 : f32
    %13 = vector.broadcast %cst_11 : f32 to vector<8x16xf32>
    %14 = arith.maximumf %12, %13 : vector<8x16xf32>
    %c0_12 = arith.constant 0 : index
    %c0_13 = arith.constant 0 : index
    %15 = vector.load %arg7[%c0_12, %c0_13] : memref<16x32xf32, #tpu.memory_space<vmem>>, vector<16x32xf32>
    %cst_14 = arith.constant dense<0.000000e+00> : vector<8x32xf32>
    %16 = tpu.matmul %14, %15, %cst_14 {dimension_numbers = #tpu.dot_dimension_numbers<[1], [0], [0], [1], [0, 0, 1, 1], [], []>} : vector<8x16xf32>, vector<16x32xf32>, vector<8x32xf32> -> vector<8x32xf32>
    %c0_15 = arith.constant 0 : index
    %c0_16 = arith.constant 0 : index
    %17 = vector.load %arg2[%c0_15, %c0_16] : memref<8x32xf32, #tpu.memory_space<vmem>>, vector<8x32xf32>
    %c0_17 = arith.constant 0 : index
    %c0_18 = arith.constant 0 : index
    %18 = vector.load %arg8[%c0_17, %c0_18] : memref<32x32xf32, #tpu.memory_space<vmem>>, vector<32x32xf32>
    %cst_19 = arith.constant dense<0.000000e+00> : vector<8x32xf32>
    %19 = tpu.matmul %17, %18, %cst_19 {dimension_numbers = #tpu.dot_dimension_numbers<[1], [0], [0], [1], [0, 0, 1, 1], [], []>} : vector<8x32xf32>, vector<32x32xf32>, vector<8x32xf32> -> vector<8x32xf32>
    %c0_20 = arith.constant 0 : index
    %c0_21 = arith.constant 0 : index
    %20 = vector.load %arg9[%c0_20, %c0_21] : memref<1x32xf32, #tpu.memory_space<vmem>>, vector<1x32xf32>
    %21 = vector.broadcast %20 : vector<1x32xf32> to vector<8x32xf32>
    %22 = arith.addf %19, %21 : vector<8x32xf32>
    %cst_22 = arith.constant 0.000000e+00 : f32
    %23 = vector.broadcast %cst_22 : f32 to vector<8x32xf32>
    %24 = arith.maximumf %22, %23 : vector<8x32xf32>
    %c0_23 = arith.constant 0 : index
    %c0_24 = arith.constant 0 : index
    %25 = vector.load %arg10[%c0_23, %c0_24] : memref<32x16xf32, #tpu.memory_space<vmem>>, vector<32x16xf32>
    %cst_25 = arith.constant dense<0.000000e+00> : vector<8x16xf32>
    %26 = tpu.matmul %24, %25, %cst_25 {dimension_numbers = #tpu.dot_dimension_numbers<[1], [0], [0], [1], [0, 0, 1, 1], [], []>} : vector<8x32xf32>, vector<32x16xf32>, vector<8x16xf32> -> vector<8x16xf32>
    %c0_26 = arith.constant 0 : index
    %c0_27 = arith.constant 0 : index
    %27 = vector.load %arg11[%c0_26, %c0_27] : memref<1x16xf32, #tpu.memory_space<vmem>>, vector<1x16xf32>
    %28 = vector.broadcast %27 : vector<1x16xf32> to vector<8x16xf32>
    %29 = arith.addf %26, %28 : vector<8x16xf32>
    %cst_28 = arith.constant 0.000000e+00 : f32
    %30 = vector.broadcast %cst_28 : f32 to vector<8x16xf32>
    %31 = arith.maximumf %29, %30 : vector<8x16xf32>
    %c0_29 = arith.constant 0 : index
    %c0_30 = arith.constant 0 : index
    %32 = vector.load %arg12[%c0_29, %c0_30] : memref<16x32xf32, #tpu.memory_space<vmem>>, vector<16x32xf32>
    %cst_31 = arith.constant dense<0.000000e+00> : vector<8x32xf32>
    %33 = tpu.matmul %31, %32, %cst_31 {dimension_numbers = #tpu.dot_dimension_numbers<[1], [0], [0], [1], [0, 0, 1, 1], [], []>} : vector<8x16xf32>, vector<16x32xf32>, vector<8x32xf32> -> vector<8x32xf32>
    %34 = arith.addf %16, %33 : vector<8x32xf32>
    %c0_32 = arith.constant 0 : index
    %c0_33 = arith.constant 0 : index
    %35 = vector.load %arg13[%c0_32, %c0_33] : memref<1x32xf32, #tpu.memory_space<vmem>>, vector<1x32xf32>
    %36 = vector.broadcast %35 : vector<1x32xf32> to vector<8x32xf32>
    %37 = arith.addf %34, %36 : vector<8x32xf32>
    %cst_34 = arith.constant 0.000000e+00 : f32
    %38 = vector.broadcast %cst_34 : f32 to vector<8x32xf32>
    %39 = arith.maximumf %37, %38 : vector<8x32xf32>
    %c0_35 = arith.constant 0 : index
    %c0_36 = arith.constant 0 : index
    %40 = vector.load %arg14[%c0_35, %c0_36] : memref<1x32xf32, #tpu.memory_space<vmem>>, vector<1x32xf32>
    %41 = tpu.transpose %39, [1, 0] : vector<8x32xf32> -> vector<32x8xf32>
    %cst_37 = arith.constant dense<0.000000e+00> : vector<1x8xf32>
    %42 = tpu.matmul %40, %41, %cst_37 {dimension_numbers = #tpu.dot_dimension_numbers<[1], [0], [0], [1], [0, 0, 1, 1], [], []>} : vector<1x32xf32>, vector<32x8xf32>, vector<1x8xf32> -> vector<1x8xf32>
    %c0_38 = arith.constant 0 : index
    %c0_39 = arith.constant 0 : index
    %43 = vector.load %arg15[%c0_38, %c0_39] : memref<1x1xf32, #tpu.memory_space<vmem>>, vector<1x1xf32>
    %44 = vector.broadcast %43 : vector<1x1xf32> to vector<1x8xf32>
    %45 = arith.addf %42, %44 : vector<1x8xf32>
    %c0_40 = arith.constant 0 : index
    %c0_41 = arith.constant 0 : index
    %46 = vector.load %arg16[%c0_40, %c0_41] : memref<1x8xf32, #tpu.memory_space<vmem>>, vector<1x8xf32>
    tpu.vector_store %arg16[%c0_40, %c0_41], %45 {strides = array<i32>} : memref<1x8xf32, #tpu.memory_space<vmem>>, vector<1x8xf32>,
    return
  }
  func.func @transform_0(%arg0: i32) -> (i32, i32) {
    %c0_i32 = arith.constant 0 : i32
    %c0_i32_0 = arith.constant 0 : i32
    return %arg0, %c0_i32 : i32, i32
  }
  func.func @transform_1(%arg0: i32) -> (i32, i32) {
    %c0_i32 = arith.constant 0 : i32
    %c0_i32_0 = arith.constant 0 : i32
    return %arg0, %c0_i32 : i32, i32
  }
  func.func @transform_2(%arg0: i32) -> (i32, i32) {
    %c0_i32 = arith.constant 0 : i32
    %c0_i32_0 = arith.constant 0 : i32
    %c0_i32_1 = arith.constant 0 : i32
    return %c0_i32, %c0_i32_0 : i32, i32
  }
  func.func @transform_3(%arg0: i32) -> (i32, i32) {
    %c0_i32 = arith.constant 0 : i32
    %c0_i32_0 = arith.constant 0 : i32
    %c0_i32_1 = arith.constant 0 : i32
    return %c0_i32, %c0_i32_0 : i32, i32
  }
  func.func @transform_4(%arg0: i32) -> (i32, i32) {
    %c0_i32 = arith.constant 0 : i32
    %c0_i32_0 = arith.constant 0 : i32
    %c0_i32_1 = arith.constant 0 : i32
    return %c0_i32, %c0_i32_0 : i32, i32
  }
  func.func @transform_5(%arg0: i32) -> (i32, i32) {
    %c0_i32 = arith.constant 0 : i32
    %c0_i32_0 = arith.constant 0 : i32
    %c0_i32_1 = arith.constant 0 : i32
    return %c0_i32, %c0_i32_0 : i32, i32
  }
  func.func @transform_6(%arg0: i32) -> (i32, i32) {
    %c0_i32 = arith.constant 0 : i32
    %c0_i32_0 = arith.constant 0 : i32
    %c0_i32_1 = arith.constant 0 : i32
    return %c0_i32, %c0_i32_0 : i32, i32
  }
  func.func @transform_7(%arg0: i32) -> (i32, i32) {
    %c0_i32 = arith.constant 0 : i32
    %c0_i32_0 = arith.constant 0 : i32
    %c0_i32_1 = arith.constant 0 : i32
    return %c0_i32, %c0_i32_0 : i32, i32
  }
  func.func @transform_8(%arg0: i32) -> (i32, i32) {
    %c0_i32 = arith.constant 0 : i32
    %c0_i32_0 = arith.constant 0 : i32
    %c0_i32_1 = arith.constant 0 : i32
    return %c0_i32, %c0_i32_0 : i32, i32
  }
  func.func @transform_9(%arg0: i32) -> (i32, i32) {
    %c0_i32 = arith.constant 0 : i32
    %c0_i32_0 = arith.constant 0 : i32
    %c0_i32_1 = arith.constant 0 : i32
    return %c0_i32, %c0_i32_0 : i32, i32
  }
  func.func @transform_10(%arg0: i32) -> (i32, i32) {
    %c0_i32 = arith.constant 0 : i32
    %c0_i32_0 = arith.constant 0 : i32
    %c0_i32_1 = arith.constant 0 : i32
    return %c0_i32, %c0_i32_0 : i32, i32
  }
  func.func @transform_11(%arg0: i32) -> (i32, i32) {
    %c0_i32 = arith.constant 0 : i32
    %c0_i32_0 = arith.constant 0 : i32
    %c0_i32_1 = arith.constant 0 : i32
    return %c0_i32, %c0_i32_0 : i32, i32
  }
  func.func @transform_12(%arg0: i32) -> (i32, i32) {
    %c0_i32 = arith.constant 0 : i32
    %c0_i32_0 = arith.constant 0 : i32
    %c0_i32_1 = arith.constant 0 : i32
    return %c0_i32, %c0_i32_0 : i32, i32
  }
  func.func @transform_13(%arg0: i32) -> (i32, i32) {
    %c0_i32 = arith.constant 0 : i32
    %c0_i32_0 = arith.constant 0 : i32
    %c0_i32_1 = arith.constant 0 : i32
    return %c0_i32, %c0_i32_0 : i32, i32
  }
  func.func @transform_14(%arg0: i32) -> (i32, i32) {
    %c0_i32 = arith.constant 0 : i32
    %c0_i32_0 = arith.constant 0 : i32
    %c0_i32_1 = arith.constant 0 : i32
    return %c0_i32, %c0_i32_0 : i32, i32
  }
  func.func @transform_15(%arg0: i32) -> (i32, i32) {
    %c0_i32 = arith.constant 0 : i32
    %c0_i32_0 = arith.constant 0 : i32
    return %c0_i32, %arg0 : i32, i32
  }
}

</mosaic_0001>

<llo_original>
// kernel: tpu_custom_call.1
$region0: #{tpu_custom_call.1}
  #allocation0 [shape = 'u32[]', space=smem, size = 0x4, offset = 0x4, fixed_abs, tag = 'smem constant byte address 0x4 - core index']
  #allocation1 [shape = 'u32[144,128]{1,0:T(1,128)}', space=vmem, size = 0x12000, scoped, tag = 'internal scratch']
  #allocation2 [shape = 'f32[1,1]{1,0:T(1,128)S(1)}', space=vmem, size = 0x200, scoped, tag = 'scoped memory for tpu_custom_call.1']
  %s0 = inlined_call_operand.hbm [shape: f32[8,16], index: 0, kind: input, shape index: {}]
  %s1 = inlined_call_operand.hbm [shape: f32[8,32], index: 1, kind: input, shape index: {}]
  %s2 = inlined_call_operand.vmem [shape: f32[16,32], index: 2, kind: input, shape index: {}]
  %s3 = inlined_call_operand.vmem [shape: f32[1,32], index: 3, kind: input, shape index: {}]
  %s4 = inlined_call_operand.vmem [shape: f32[32,16], index: 4, kind: input, shape index: {}]
  %s5 = inlined_call_operand.vmem [shape: f32[1,16], index: 5, kind: input, shape index: {}]
  %s6 = inlined_call_operand.vmem [shape: f32[16,32], index: 6, kind: input, shape index: {}]
  %s7 = inlined_call_operand.vmem [shape: f32[32,32], index: 7, kind: input, shape index: {}]
  %s8 = inlined_call_operand.vmem [shape: f32[1,32], index: 8, kind: input, shape index: {}]
  %s9 = inlined_call_operand.vmem [shape: f32[32,16], index: 9, kind: input, shape index: {}]
  %s10 = inlined_call_operand.vmem [shape: f32[1,16], index: 10, kind: input, shape index: {}]
  %s11 = inlined_call_operand.vmem [shape: f32[16,32], index: 11, kind: input, shape index: {}]
  %s12 = inlined_call_operand.vmem [shape: f32[1,32], index: 12, kind: input, shape index: {}]
  %s13 = inlined_call_operand.vmem [shape: f32[1,32], index: 13, kind: input, shape index: {}]
  %s14 = inlined_call_operand.<no memory space> [shape: f32[1,1], index: 14, kind: input, shape index: {}]
  %s15 = inlined_call_operand.hbm [shape: f32[1,8], index: 15, kind: output, shape index: {}]
  %s16 = sld [smem:[#allocation0]]
  $region78: #{tpu_custom_call.1} parent=0
    _
  %s18 = ssub.s32 1, %s16
  %s19 = scalar_select 0, %s18, %s16
  %v20 = vstv %s14
  %21 = vst [vmem:[#allocation2] sm:$0x1] %v20
  $region1: #{tpu_custom_call.1} parent=0
    #allocation3 [shape = 'u8[4096]{0}', space=vmem, size = 0x1000, scoped, tag = 'input window, operand 0, single buffered']
    #allocation4 [shape = 's32[1]{0}', space=sflag, size = 0x4, scoped, tag = 'scoped memory for tpu_custom_call.1']
    #allocation5 [shape = 's32[1]{0}', space=sflag, size = 0x4, scoped, tag = 'scoped memory for tpu_custom_call.1']
    #allocation6 [shape = 'u8[4096]{0}', space=vmem, size = 0x1000, scoped, tag = 'input window, operand 1, single buffered']
    #allocation7 [shape = 's32[1]{0}', space=sflag, size = 0x4, scoped, tag = 'scoped memory for tpu_custom_call.1']
    #allocation8 [shape = 'u8[512]{0}', space=vmem, size = 0x400, scoped, tag = 'output window, operand 0, single buffered']
    %22 = vsyncpa [#allocation4], 0
    %23 = vsyncpa [#allocation7], 0
    %24 = vsyncpa [#allocation5], 0
    // Predicated region
    $region2: #{tpu_custom_call.1} parent=1 // pred_check
      _
    $region3: #{tpu_custom_call.1} parent=1 // pred_check_branch
      %26 = sbr.rel (0) target = $region5
    $region4: #{tpu_custom_call.1} parent=1 // pred_region
      %s28 = ssub.s32 128, 128
      %29 = vsyncadd [#allocation4], %s28
      %s31 = sshll.u32 [#allocation3], 4
      %s32 = int_to_ptr.vmem [resolvable:$true] %s31
      %34 = dma.hbm_to_vmem [thread:$0]  %s0, 128, %s32, [#allocation4]
    $region5: #{tpu_custom_call.1} parent=1 // pred_fallthru
      _
    // Predicated region
    $region6: #{tpu_custom_call.1} parent=1 // pred_check
      _
    $region7: #{tpu_custom_call.1} parent=1 // pred_check_branch
      %36 = sbr.rel (0) target = $region9
    $region8: #{tpu_custom_call.1} parent=1 // pred_region
      %s38 = ssub.s32 128, 128
      %39 = vsyncadd [#allocation7], %s38
      %s41 = sshll.u32 [#allocation6], 4
      %s42 = int_to_ptr.vmem [resolvable:$true] %s41
      %44 = dma.hbm_to_vmem [thread:$0]  %s1, 128, %s42, [#allocation7]
    $region9: #{tpu_custom_call.1} parent=1 // pred_fallthru
      _
    // Predicated region
    $region10: #{tpu_custom_call.1} parent=1 // pred_check
      _
    $region11: #{tpu_custom_call.1} parent=1 // pred_check_branch
      %46 = sbr.rel (0) target = $region13
    $region12: #{tpu_custom_call.1} parent=1 // pred_region
      _
    $region13: #{tpu_custom_call.1} parent=1 // pred_fallthru
      _
    // Predicated region
    $region14: #{tpu_custom_call.1} parent=1 // pred_check
      _
    $region15: #{tpu_custom_call.1} parent=1 // pred_check_branch
      %48 = sbr.rel (0) target = $region17
    $region16: #{tpu_custom_call.1} parent=1 // pred_region
      _
    $region17: #{tpu_custom_call.1} parent=1 // pred_fallthru
      _
    // Predicated region
    $region18: #{tpu_custom_call.1} parent=1 // pred_check
      _
    $region19: #{tpu_custom_call.1} parent=1 // pred_check_branch
      %50 = sbr.rel (0) target = $region21
    $region20: #{tpu_custom_call.1} parent=1 // pred_region
      _
    $region21: #{tpu_custom_call.1} parent=1 // pred_fallthru
      _
    // Predicated region
    $region22: #{tpu_custom_call.1} parent=1 // pred_check
      _
    $region23: #{tpu_custom_call.1} parent=1 // pred_check_branch
      %52 = sbr.rel (0) target = $region25
    $region24: #{tpu_custom_call.1} parent=1 // pred_region
      _
    $region25: #{tpu_custom_call.1} parent=1 // pred_fallthru
      _
    // Predicated region
    $region26: #{tpu_custom_call.1} parent=1 // pred_check
      _
    $region27: #{tpu_custom_call.1} parent=1 // pred_check_branch
      %54 = sbr.rel (0) target = $region29
    $region28: #{tpu_custom_call.1} parent=1 // pred_region
      _
    $region29: #{tpu_custom_call.1} parent=1 // pred_fallthru
      _
    // Predicated region
    $region30: #{tpu_custom_call.1} parent=1 // pred_check
      _
    $region31: #{tpu_custom_call.1} parent=1 // pred_check_branch
      %56 = sbr.rel (0) target = $region33
    $region32: #{tpu_custom_call.1} parent=1 // pred_region
      _
    $region33: #{tpu_custom_call.1} parent=1 // pred_fallthru
      _
    // Predicated region
    $region34: #{tpu_custom_call.1} parent=1 // pred_check
      _
    $region35: #{tpu_custom_call.1} parent=1 // pred_check_branch
      %58 = sbr.rel (0) target = $region37
    $region36: #{tpu_custom_call.1} parent=1 // pred_region
      _
    $region37: #{tpu_custom_call.1} parent=1 // pred_fallthru
      _
    // Predicated region
    $region38: #{tpu_custom_call.1} parent=1 // pred_check
      _
    $region39: #{tpu_custom_call.1} parent=1 // pred_check_branch
      %60 = sbr.rel (0) target = $region41
    $region40: #{tpu_custom_call.1} parent=1 // pred_region
      _
    $region41: #{tpu_custom_call.1} parent=1 // pred_fallthru
      _
    // Predicated region
    $region42: #{tpu_custom_call.1} parent=1 // pred_check
      _
    $region43: #{tpu_custom_call.1} parent=1 // pred_check_branch
      %62 = sbr.rel (0) target = $region45
    $region44: #{tpu_custom_call.1} parent=1 // pred_region
      _
    $region45: #{tpu_custom_call.1} parent=1 // pred_fallthru
      _
    // Predicated region
    $region46: #{tpu_custom_call.1} parent=1 // pred_check
      _
    $region47: #{tpu_custom_call.1} parent=1 // pred_check_branch
      %64 = sbr.rel (0) target = $region49
    $region48: #{tpu_custom_call.1} parent=1 // pred_region
      _
    $region49: #{tpu_custom_call.1} parent=1 // pred_fallthru
      _
    // Predicated region
    $region50: #{tpu_custom_call.1} parent=1 // pred_check
      _
    $region51: #{tpu_custom_call.1} parent=1 // pred_check_branch
      %66 = sbr.rel (0) target = $region53
    $region52: #{tpu_custom_call.1} parent=1 // pred_region
      _
    $region53: #{tpu_custom_call.1} parent=1 // pred_fallthru
      _
    // Predicated region
    $region54: #{tpu_custom_call.1} parent=1 // pred_check
      _
    $region55: #{tpu_custom_call.1} parent=1 // pred_check_branch
      %68 = sbr.rel (0) target = $region57
    $region56: #{tpu_custom_call.1} parent=1 // pred_region
      _
    $region57: #{tpu_custom_call.1} parent=1 // pred_fallthru
      _
    // Predicated region
    $region58: #{tpu_custom_call.1} parent=1 // pred_check
      _
    $region59: #{tpu_custom_call.1} parent=1 // pred_check_branch
      %70 = sbr.rel (0) target = $region61
    $region60: #{tpu_custom_call.1} parent=1 // pred_region
      _
    $region61: #{tpu_custom_call.1} parent=1 // pred_fallthru
      _
    // Predicated region
    $region62: #{tpu_custom_call.1} parent=1 // pred_check
      _
    $region63: #{tpu_custom_call.1} parent=1 // pred_check_branch
      %72 = sbr.rel (0) target = $region65
    $region64: #{tpu_custom_call.1} parent=1 // pred_region
      %73 = dma.done [#allocation4], 128
    $region65: #{tpu_custom_call.1} parent=1 // pred_fallthru
      _
    // Predicated region
    $region66: #{tpu_custom_call.1} parent=1 // pred_check
      _
    $region67: #{tpu_custom_call.1} parent=1 // pred_check_branch
      %75 = sbr.rel (0) target = $region69
    $region68: #{tpu_custom_call.1} parent=1 // pred_region
      %76 = dma.done [#allocation7], 128
    $region69: #{tpu_custom_call.1} parent=1 // pred_fallthru
      _
    %v77 = vld [vmem:[#allocation3] sm:$0xff]
    %v78 = vld [vmem:[%s2] sm:$0xff]
    %v79 = vld [vmem:[%s2 + $0x8] sm:$0xff]
    %v80 = vld [vmem:[%s3] sm:$0x1]
    %v82 = vlaneseq
    %v83 = vshrl.u32 %v82, 7
    %v84 = vsub.s32 0, %v83
    %v85 = vrot.slane %v80, %v84
    %vm87 = vcmask 130048
    %v89 = vsel %vm87, %v77, 0
    %91 = vmatprep.subr.mxu0 0.0
    %92 = vmatpush1.msra.mxu0 0.0
    %93 = vmatprep.subr.mxu0 0.0
    %94 = vmatpush1.msra.mxu0 0.0
    %95 = vmatprep.subr.mxu0 0.0
    %96 = vmatpush1.msra.mxu0 0.0
    %97 = vmatprep.subr.mxu0 0.0
    %98 = vmatpush1.msra.mxu0 0.0
    %99 = vmatprep.subr.mxu0 0.0
    %100 = vmatpush1.msra.mxu0 0.0
    %101 = vmatprep.subr.mxu0 0.0
    %102 = vmatpush1.msra.mxu0 0.0
    %103 = vmatprep.subr.mxu0 0.0
    %104 = vmatpush1.msra.mxu0 0.0
    %105 = vmatprep.subr.mxu0 0.0
    %106 = vmatpush1.msra.mxu0 0.0
    %107 = vmatprep.subr.mxu0 0.0
    %108 = vmatpush1.msra.mxu0 0.0
    %109 = vmatprep.subr.mxu0 0.0
    %110 = vmatpush1.msra.mxu0 0.0
    %111 = vmatprep.subr.mxu0 0.0
    %112 = vmatpush1.msra.mxu0 0.0
    %113 = vmatprep.subr.mxu0 0.0
    %114 = vmatpush1.msra.mxu0 0.0
    %115 = vmatprep.subr.mxu0 0.0
    %116 = vmatpush1.msra.mxu0 0.0
    %117 = vmatprep.subr.mxu0 0.0
    %118 = vmatpush1.msra.mxu0 0.0
    %119 = vmatprep.subr.mxu0 0.0
    %120 = vmatpush1.msra.mxu0 %v79
    %121 = vmatprep.subr.mxu0 0.0
    %122 = vmatpush1.msra.mxu0 %v78
    %123 = vmatprep.subr.mxu0 0.0
    %124 = vmatpush2.msra.mxu0 0.0
    %125 = vmatprep.subr.mxu0 0.0
    %126 = vmatpush2.msra.mxu0 0.0
    %127 = vmatprep.subr.mxu0 0.0
    %128 = vmatpush2.msra.mxu0 0.0
    %129 = vmatprep.subr.mxu0 0.0
    %130 = vmatpush2.msra.mxu0 0.0
    %131 = vmatprep.subr.mxu0 0.0
    %132 = vmatpush2.msra.mxu0 0.0
    %133 = vmatprep.subr.mxu0 0.0
    %134 = vmatpush2.msra.mxu0 0.0
    %135 = vmatprep.subr.mxu0 0.0
    %136 = vmatpush2.msra.mxu0 0.0
    %137 = vmatprep.subr.mxu0 0.0
    %138 = vmatpush2.msra.mxu0 0.0
    %139 = vmatprep.subr.mxu0 0.0
    %140 = vmatpush2.msra.mxu0 0.0
    %141 = vmatprep.subr.mxu0 0.0
    %142 = vmatpush2.msra.mxu0 0.0
    %143 = vmatprep.subr.mxu0 0.0
    %144 = vmatpush2.msra.mxu0 0.0
    %145 = vmatprep.subr.mxu0 0.0
    %146 = vmatpush2.msra.mxu0 0.0
    %147 = vmatprep.subr.mxu0 0.0
    %148 = vmatpush2.msra.mxu0 0.0
    %149 = vmatprep.subr.mxu0 0.0
    %150 = vmatpush2.msra.mxu0 0.0
    %151 = vmatprep.subr.mxu0 0.0
    %152 = vmatpush2.msra.mxu0 0.0
    %153 = vmatprep.subr.mxu0 0.0
    %154 = vmatpush2.msra.mxu0 0.0
    %155 = vmatprep.mubr.f32.mxu0 0.0
    %156 = vmatmul.mubr.f32.gmra.mxu0 %v89
    %v157 = vpop.f32.mrf.mxu0
    %v158 = vadd.f32 %v85, %v157
    %v159 = vpop.f32.mrf.mxu0
    %160 = vdwg.mxu0
    %v161 = vmax.f32 %v158, 0.0
    %v162 = vld [vmem:[%s4] sm:$0xff]
    %v163 = vld [vmem:[%s4 + $0x8] sm:$0xff]
    %v164 = vld [vmem:[%s4 + $0x10] sm:$0xff]
    %v165 = vld [vmem:[%s4 + $0x18] sm:$0xff]
    %v166 = vld [vmem:[%s5] sm:$0x1]
    %v168 = vlaneseq
    %v169 = vshrl.u32 %v168, 7
    %v170 = vsub.s32 0, %v169
    %v171 = vrot.slane %v166, %v170
    %vm173 = vcmask 261120
    %v175 = vsel %vm173, %v161, 0
    %177 = vmatprep.subr.mxu0 0.0
    %178 = vmatpush1.msra.mxu0 0.0
    %179 = vmatprep.subr.mxu0 0.0
    %180 = vmatpush1.msra.mxu0 0.0
    %181 = vmatprep.subr.mxu0 0.0
    %182 = vmatpush1.msra.mxu0 0.0
    %183 = vmatprep.subr.mxu0 0.0
    %184 = vmatpush1.msra.mxu0 0.0
    %185 = vmatprep.subr.mxu0 0.0
    %186 = vmatpush1.msra.mxu0 0.0
    %187 = vmatprep.subr.mxu0 0.0
    %188 = vmatpush1.msra.mxu0 0.0
    %189 = vmatprep.subr.mxu0 0.0
    %190 = vmatpush1.msra.mxu0 0.0
    %191 = vmatprep.subr.mxu0 0.0
    %192 = vmatpush1.msra.mxu0 0.0
    %193 = vmatprep.subr.mxu0 0.0
    %194 = vmatpush1.msra.mxu0 0.0
    %195 = vmatprep.subr.mxu0 0.0
    %196 = vmatpush1.msra.mxu0 0.0
    %197 = vmatprep.subr.mxu0 0.0
    %198 = vmatpush1.msra.mxu0 0.0
    %199 = vmatprep.subr.mxu0 0.0
    %200 = vmatpush1.msra.mxu0 0.0
    %201 = vmatprep.subr.mxu0 0.0
    %202 = vmatpush1.msra.mxu0 %v165
    %203 = vmatprep.subr.mxu0 0.0
    %204 = vmatpush1.msra.mxu0 %v164
    %205 = vmatprep.subr.mxu0 0.0
    %206 = vmatpush1.msra.mxu0 %v163
    %207 = vmatprep.subr.mxu0 0.0
    %208 = vmatpush1.msra.mxu0 %v162
    %209 = vmatprep.subr.mxu0 0.0
    %210 = vmatpush2.msra.mxu0 0.0
    %211 = vmatprep.subr.mxu0 0.0
    %212 = vmatpush2.msra.mxu0 0.0
    %213 = vmatprep.subr.mxu0 0.0
    %214 = vmatpush2.msra.mxu0 0.0
    %215 = vmatprep.subr.mxu0 0.0
    %216 = vmatpush2.msra.mxu0 0.0
    %217 = vmatprep.subr.mxu0 0.0
    %218 = vmatpush2.msra.mxu0 0.0
    %219 = vmatprep.subr.mxu0 0.0
    %220 = vmatpush2.msra.mxu0 0.0
    %221 = vmatprep.subr.mxu0 0.0
    %222 = vmatpush2.msra.mxu0 0.0
    %223 = vmatprep.subr.mxu0 0.0
    %224 = vmatpush2.msra.mxu0 0.0
    %225 = vmatprep.subr.mxu0 0.0
    %226 = vmatpush2.msra.mxu0 0.0
    %227 = vmatprep.subr.mxu0 0.0
    %228 = vmatpush2.msra.mxu0 0.0
    %229 = vmatprep.subr.mxu0 0.0
    %230 = vmatpush2.msra.mxu0 0.0
    %231 = vmatprep.subr.mxu0 0.0
    %232 = vmatpush2.msra.mxu0 0.0
    %233 = vmatprep.subr.mxu0 0.0
    %234 = vmatpush2.msra.mxu0 0.0
    %235 = vmatprep.subr.mxu0 0.0
    %236 = vmatpush2.msra.mxu0 0.0
    %237 = vmatprep.subr.mxu0 0.0
    %238 = vmatpush2.msra.mxu0 0.0
    %239 = vmatprep.subr.mxu0 0.0
    %240 = vmatpush2.msra.mxu0 0.0
    %241 = vmatprep.mubr.f32.mxu0 0.0
    %242 = vmatmul.mubr.f32.gmra.mxu0 %v175
    %v243 = vpop.f32.mrf.mxu0
    %v244 = vadd.f32 %v171, %v243
    %v245 = vpop.f32.mrf.mxu0
    %246 = vdwg.mxu0
    %v247 = vmax.f32 %v244, 0.0
    %v248 = vld [vmem:[%s6] sm:$0xff]
    %v249 = vld [vmem:[%s6 + $0x8] sm:$0xff]
    %v250 = vld [vmem:[#allocation6] sm:$0xff]
    %v251 = vld [vmem:[%s7] sm:$0xff]
    %v252 = vld [vmem:[%s7 + $0x8] sm:$0xff]
    %v253 = vld [vmem:[%s7 + $0x10] sm:$0xff]
    %v254 = vld [vmem:[%s7 + $0x18] sm:$0xff]
    %v255 = vld [vmem:[%s8] sm:$0x1]
    %v257 = vlaneseq
    %v258 = vshrl.u32 %v257, 7
    %v259 = vsub.s32 0, %v258
    %v260 = vrot.slane %v255, %v259
    %v263 = vsel %vm173, %v250, 0
    %265 = vmatprep.subr.mxu0 0.0
    %266 = vmatpush1.msra.mxu0 0.0
    %267 = vmatprep.subr.mxu0 0.0
    %268 = vmatpush1.msra.mxu0 0.0
    %269 = vmatprep.subr.mxu0 0.0
    %270 = vmatpush1.msra.mxu0 0.0
    %271 = vmatprep.subr.mxu0 0.0
    %272 = vmatpush1.msra.mxu0 0.0
    %273 = vmatprep.subr.mxu0 0.0
    %274 = vmatpush1.msra.mxu0 0.0
    %275 = vmatprep.subr.mxu0 0.0
    %276 = vmatpush1.msra.mxu0 0.0
    %277 = vmatprep.subr.mxu0 0.0
    %278 = vmatpush1.msra.mxu0 0.0
    %279 = vmatprep.subr.mxu0 0.0
    %280 = vmatpush1.msra.mxu0 0.0
    %281 = vmatprep.subr.mxu0 0.0
    %282 = vmatpush1.msra.mxu0 0.0
    %283 = vmatprep.subr.mxu0 0.0
    %284 = vmatpush1.msra.mxu0 0.0
    %285 = vmatprep.subr.mxu0 0.0
    %286 = vmatpush1.msra.mxu0 0.0
    %287 = vmatprep.subr.mxu0 0.0
    %288 = vmatpush1.msra.mxu0 0.0
    %289 = vmatprep.subr.mxu0 0.0
    %290 = vmatpush1.msra.mxu0 %v254
    %291 = vmatprep.subr.mxu0 0.0
    %292 = vmatpush1.msra.mxu0 %v253
    %293 = vmatprep.subr.mxu0 0.0
    %294 = vmatpush1.msra.mxu0 %v252
    %295 = vmatprep.subr.mxu0 0.0
    %296 = vmatpush1.msra.mxu0 %v251
    %297 = vmatprep.subr.mxu0 0.0
    %298 = vmatpush2.msra.mxu0 0.0
    %299 = vmatprep.subr.mxu0 0.0
    %300 = vmatpush2.msra.mxu0 0.0
    %301 = vmatprep.subr.mxu0 0.0
    %302 = vmatpush2.msra.mxu0 0.0
    %303 = vmatprep.subr.mxu0 0.0
    %304 = vmatpush2.msra.mxu0 0.0
    %305 = vmatprep.subr.mxu0 0.0
    %306 = vmatpush2.msra.mxu0 0.0
    %307 = vmatprep.subr.mxu0 0.0
    %308 = vmatpush2.msra.mxu0 0.0
    %309 = vmatprep.subr.mxu0 0.0
    %310 = vmatpush2.msra.mxu0 0.0
    %311 = vmatprep.subr.mxu0 0.0
    %312 = vmatpush2.msra.mxu0 0.0
    %313 = vmatprep.subr.mxu0 0.0
    %314 = vmatpush2.msra.mxu0 0.0
    %315 = vmatprep.subr.mxu0 0.0
    %316 = vmatpush2.msra.mxu0 0.0
    %317 = vmatprep.subr.mxu0 0.0
    %318 = vmatpush2.msra.mxu0 0.0
    %319 = vmatprep.subr.mxu0 0.0
    %320 = vmatpush2.msra.mxu0 0.0
    %321 = vmatprep.subr.mxu0 0.0
    %322 = vmatpush2.msra.mxu0 0.0
    %323 = vmatprep.subr.mxu0 0.0
    %324 = vmatpush2.msra.mxu0 0.0
    %325 = vmatprep.subr.mxu0 0.0
    %326 = vmatpush2.msra.mxu0 0.0
    %327 = vmatprep.subr.mxu0 0.0
    %328 = vmatpush2.msra.mxu0 0.0
    %329 = vmatprep.mubr.f32.mxu0 0.0
    %330 = vmatmul.mubr.f32.gmra.mxu0 %v263
    %v331 = vpop.f32.mrf.mxu0
    %v332 = vadd.f32 %v260, %v331
    %v333 = vpop.f32.mrf.mxu0
    %334 = vdwg.mxu0
    %v335 = vmax.f32 %v332, 0.0
    %v336 = vld [vmem:[%s9] sm:$0xff]
    %v337 = vld [vmem:[%s9 + $0x8] sm:$0xff]
    %v338 = vld [vmem:[%s9 + $0x10] sm:$0xff]
    %v339 = vld [vmem:[%s9 + $0x18] sm:$0xff]
    %v340 = vld [vmem:[%s10] sm:$0x1]
    %v342 = vlaneseq
    %v343 = vshrl.u32 %v342, 7
    %v344 = vsub.s32 0, %v343
    %v345 = vrot.slane %v340, %v344
    %v348 = vsel %vm173, %v335, 0
    %350 = vmatprep.subr.mxu0 0.0
    %351 = vmatpush1.msra.mxu0 0.0
    %352 = vmatprep.subr.mxu0 0.0
    %353 = vmatpush1.msra.mxu0 0.0
    %354 = vmatprep.subr.mxu0 0.0
    %355 = vmatpush1.msra.mxu0 0.0
    %356 = vmatprep.subr.mxu0 0.0
    %357 = vmatpush1.msra.mxu0 0.0
    %358 = vmatprep.subr.mxu0 0.0
    %359 = vmatpush1.msra.mxu0 0.0
    %360 = vmatprep.subr.mxu0 0.0
    %361 = vmatpush1.msra.mxu0 0.0
    %362 = vmatprep.subr.mxu0 0.0
    %363 = vmatpush1.msra.mxu0 0.0
    %364 = vmatprep.subr.mxu0 0.0
    %365 = vmatpush1.msra.mxu0 0.0
    %366 = vmatprep.subr.mxu0 0.0
    %367 = vmatpush1.msra.mxu0 0.0
    %368 = vmatprep.subr.mxu0 0.0
    %369 = vmatpush1.msra.mxu0 0.0
    %370 = vmatprep.subr.mxu0 0.0
    %371 = vmatpush1.msra.mxu0 0.0
    %372 = vmatprep.subr.mxu0 0.0
    %373 = vmatpush1.msra.mxu0 0.0
    %374 = vmatprep.subr.mxu0 0.0
    %375 = vmatpush1.msra.mxu0 %v339
    %376 = vmatprep.subr.mxu0 0.0
    %377 = vmatpush1.msra.mxu0 %v338
    %378 = vmatprep.subr.mxu0 0.0
    %379 = vmatpush1.msra.mxu0 %v337
    %380 = vmatprep.subr.mxu0 0.0
    %381 = vmatpush1.msra.mxu0 %v336
    %382 = vmatprep.subr.mxu0 0.0
    %383 = vmatpush2.msra.mxu0 0.0
    %384 = vmatprep.subr.mxu0 0.0
    %385 = vmatpush2.msra.mxu0 0.0
    %386 = vmatprep.subr.mxu0 0.0
    %387 = vmatpush2.msra.mxu0 0.0
    %388 = vmatprep.subr.mxu0 0.0
    %389 = vmatpush2.msra.mxu0 0.0
    %390 = vmatprep.subr.mxu0 0.0
    %391 = vmatpush2.msra.mxu0 0.0
    %392 = vmatprep.subr.mxu0 0.0
    %393 = vmatpush2.msra.mxu0 0.0
    %394 = vmatprep.subr.mxu0 0.0
    %395 = vmatpush2.msra.mxu0 0.0
    %396 = vmatprep.subr.mxu0 0.0
    %397 = vmatpush2.msra.mxu0 0.0
    %398 = vmatprep.subr.mxu0 0.0
    %399 = vmatpush2.msra.mxu0 0.0
    %400 = vmatprep.subr.mxu0 0.0
    %401 = vmatpush2.msra.mxu0 0.0
    %402 = vmatprep.subr.mxu0 0.0
    %403 = vmatpush2.msra.mxu0 0.0
    %404 = vmatprep.subr.mxu0 0.0
    %405 = vmatpush2.msra.mxu0 0.0
    %406 = vmatprep.subr.mxu0 0.0
    %407 = vmatpush2.msra.mxu0 0.0
    %408 = vmatprep.subr.mxu0 0.0
    %409 = vmatpush2.msra.mxu0 0.0
    %410 = vmatprep.subr.mxu0 0.0
    %411 = vmatpush2.msra.mxu0 0.0
    %412 = vmatprep.subr.mxu0 0.0
    %413 = vmatpush2.msra.mxu0 0.0
    %414 = vmatprep.mubr.f32.mxu0 0.0
    %415 = vmatmul.mubr.f32.gmra.mxu0 %v348
    %v416 = vpop.f32.mrf.mxu0
    %v417 = vadd.f32 %v345, %v416
    %v418 = vpop.f32.mrf.mxu0
    %419 = vdwg.mxu0
    %v420 = vmax.f32 %v417, 0.0
    %v421 = vld [vmem:[%s11] sm:$0xff]
    %v422 = vld [vmem:[%s11 + $0x8] sm:$0xff]
    %v424 = vsel %vm87, %v420, 0
    %426 = vmatprep.subr.mxu0 0.0
    %427 = vmatpush1.msra.mxu0 0.0
    %428 = vmatprep.subr.mxu0 0.0
    %429 = vmatpush1.msra.mxu0 0.0
    %430 = vmatprep.subr.mxu0 0.0
    %431 = vmatpush1.msra.mxu0 0.0
    %432 = vmatprep.subr.mxu0 0.0
    %433 = vmatpush1.msra.mxu0 0.0
    %434 = vmatprep.subr.mxu0 0.0
    %435 = vmatpush1.msra.mxu0 0.0
    %436 = vmatprep.subr.mxu0 0.0
    %437 = vmatpush1.msra.mxu0 0.0
    %438 = vmatprep.subr.mxu0 0.0
    %439 = vmatpush1.msra.mxu0 0.0
    %440 = vmatprep.subr.mxu0 0.0
    %441 = vmatpush1.msra.mxu0 0.0
    %442 = vmatprep.subr.mxu0 0.0
    %443 = vmatpush1.msra.mxu0 0.0
    %444 = vmatprep.subr.mxu0 0.0
    %445 = vmatpush1.msra.mxu0 0.0
    %446 = vmatprep.subr.mxu0 0.0
    %447 = vmatpush1.msra.mxu0 0.0
    %448 = vmatprep.subr.mxu0 0.0
    %449 = vmatpush1.msra.mxu0 0.0
    %450 = vmatprep.subr.mxu0 0.0
    %451 = vmatpush1.msra.mxu0 0.0
    %452 = vmatprep.subr.mxu0 0.0
    %453 = vmatpush1.msra.mxu0 0.0
    %454 = vmatprep.subr.mxu0 0.0
    %455 = vmatpush1.msra.mxu0 %v422
    %456 = vmatprep.subr.mxu0 0.0
    %457 = vmatpush1.msra.mxu0 %v421
    %458 = vmatprep.subr.mxu0 0.0
    %459 = vmatpush2.msra.mxu0 0.0
    %460 = vmatprep.subr.mxu0 0.0
    %461 = vmatpush2.msra.mxu0 0.0
    %462 = vmatprep.subr.mxu0 0.0
    %463 = vmatpush2.msra.mxu0 0.0
    %464 = vmatprep.subr.mxu0 0.0
    %465 = vmatpush2.msra.mxu0 0.0
    %466 = vmatprep.subr.mxu0 0.0
    %467 = vmatpush2.msra.mxu0 0.0
    %468 = vmatprep.subr.mxu0 0.0
    %469 = vmatpush2.msra.mxu0 0.0
    %470 = vmatprep.subr.mxu0 0.0
    %471 = vmatpush2.msra.mxu0 0.0
    %472 = vmatprep.subr.mxu0 0.0
    %473 = vmatpush2.msra.mxu0 0.0
    %474 = vmatprep.subr.mxu0 0.0
    %475 = vmatpush2.msra.mxu0 0.0
    %476 = vmatprep.subr.mxu0 0.0
    %477 = vmatpush2.msra.mxu0 0.0
    %478 = vmatprep.subr.mxu0 0.0
    %479 = vmatpush2.msra.mxu0 0.0
    %480 = vmatprep.subr.mxu0 0.0
    %481 = vmatpush2.msra.mxu0 0.0
    %482 = vmatprep.subr.mxu0 0.0
    %483 = vmatpush2.msra.mxu0 0.0
    %484 = vmatprep.subr.mxu0 0.0
    %485 = vmatpush2.msra.mxu0 0.0
    %486 = vmatprep.subr.mxu0 0.0
    %487 = vmatpush2.msra.mxu0 0.0
    %488 = vmatprep.subr.mxu0 0.0
    %489 = vmatpush2.msra.mxu0 0.0
    %490 = vmatprep.mubr.f32.mxu0 0.0
    %491 = vmatmul.mubr.f32.gmra.mxu0 %v424
    %v492 = vpop.f32.mrf.mxu0
    %v493 = vadd.f32 0.0, %v492
    %v494 = vpop.f32.mrf.mxu0
    %495 = vdwg.mxu0
    %v497 = vsel %vm87, %v247, 0
    %499 = vmatprep.subr.mxu0 0.0
    %500 = vmatpush1.msra.mxu0 0.0
    %501 = vmatprep.subr.mxu0 0.0
    %502 = vmatpush1.msra.mxu0 0.0
    %503 = vmatprep.subr.mxu0 0.0
    %504 = vmatpush1.msra.mxu0 0.0
    %505 = vmatprep.subr.mxu0 0.0
    %506 = vmatpush1.msra.mxu0 0.0
    %507 = vmatprep.subr.mxu0 0.0
    %508 = vmatpush1.msra.mxu0 0.0
    %509 = vmatprep.subr.mxu0 0.0
    %510 = vmatpush1.msra.mxu0 0.0
    %511 = vmatprep.subr.mxu0 0.0
    %512 = vmatpush1.msra.mxu0 0.0
    %513 = vmatprep.subr.mxu0 0.0
    %514 = vmatpush1.msra.mxu0 0.0
    %515 = vmatprep.subr.mxu0 0.0
    %516 = vmatpush1.msra.mxu0 0.0
    %517 = vmatprep.subr.mxu0 0.0
    %518 = vmatpush1.msra.mxu0 0.0
    %519 = vmatprep.subr.mxu0 0.0
    %520 = vmatpush1.msra.mxu0 0.0
    %521 = vmatprep.subr.mxu0 0.0
    %522 = vmatpush1.msra.mxu0 0.0
    %523 = vmatprep.subr.mxu0 0.0
    %524 = vmatpush1.msra.mxu0 0.0
    %525 = vmatprep.subr.mxu0 0.0
    %526 = vmatpush1.msra.mxu0 0.0
    %527 = vmatprep.subr.mxu0 0.0
    %528 = vmatpush1.msra.mxu0 %v249
    %529 = vmatprep.subr.mxu0 0.0
    %530 = vmatpush1.msra.mxu0 %v248
    %531 = vmatprep.subr.mxu0 0.0
    %532 = vmatpush2.msra.mxu0 0.0
    %533 = vmatprep.subr.mxu0 0.0
    %534 = vmatpush2.msra.mxu0 0.0
    %535 = vmatprep.subr.mxu0 0.0
    %536 = vmatpush2.msra.mxu0 0.0
    %537 = vmatprep.subr.mxu0 0.0
    %538 = vmatpush2.msra.mxu0 0.0
    %539 = vmatprep.subr.mxu0 0.0
    %540 = vmatpush2.msra.mxu0 0.0
    %541 = vmatprep.subr.mxu0 0.0
    %542 = vmatpush2.msra.mxu0 0.0
    %543 = vmatprep.subr.mxu0 0.0
    %544 = vmatpush2.msra.mxu0 0.0
    %545 = vmatprep.subr.mxu0 0.0
    %546 = vmatpush2.msra.mxu0 0.0
    %547 = vmatprep.subr.mxu0 0.0
    %548 = vmatpush2.msra.mxu0 0.0
    %549 = vmatprep.subr.mxu0 0.0
    %550 = vmatpush2.msra.mxu0 0.0
    %551 = vmatprep.subr.mxu0 0.0
    %552 = vmatpush2.msra.mxu0 0.0
    %553 = vmatprep.subr.mxu0 0.0
    %554 = vmatpush2.msra.mxu0 0.0
    %555 = vmatprep.subr.mxu0 0.0
    %556 = vmatpush2.msra.mxu0 0.0
    %557 = vmatprep.subr.mxu0 0.0
    %558 = vmatpush2.msra.mxu0 0.0
    %559 = vmatprep.subr.mxu0 0.0
    %560 = vmatpush2.msra.mxu0 0.0
    %561 = vmatprep.subr.mxu0 0.0
    %562 = vmatpush2.msra.mxu0 0.0
    %563 = vmatprep.mubr.f32.mxu0 0.0
    %564 = vmatmul.mubr.f32.gmra.mxu0 %v497
    %v565 = vpop.f32.mrf.mxu0
    %v566 = vadd.f32 %v493, %v565
    %v567 = vpop.f32.mrf.mxu0
    %568 = vdwg.mxu0
    %v569 = vld [vmem:[%s12] sm:$0x1]
    %v571 = vlaneseq
    %v572 = vshrl.u32 %v571, 7
    %v573 = vsub.s32 0, %v572
    %v574 = vrot.slane %v569, %v573
    %v576 = vadd.f32 %v566, %v574
    %v577 = vmax.f32 %v576, 0.0
    %v578 = vld [vmem:[%s13] sm:$0x1]
    %v579 = vld [vmem:[#allocation2] sm:$0x1]
    %581 = vset.pattern.permute.xlu0 0
    %582 = vperm.xlu0 %581, %v579
    %v583 = vpop.permute.xlu0 %582
    %v585 = vlaneseq
    %v586 = vshrl.u32 %v585, 7
    %v587 = vsub.s32 0, %v586
    %v588 = vrot.slane %v583, %v587
    %v590 = vsel %vm173, %v578, 0
    %v593 = vsel %vm173, %v577, 0
    %595 = vmatprep.subr.mxu0 0.0
    %596 = vmatpush1.xpose.msra.mxu0 0.0
    %597 = vmatprep.subr.mxu0 0.0
    %598 = vmatpush1.xpose.msra.mxu0 0.0
    %599 = vmatprep.subr.mxu0 0.0
    %600 = vmatpush1.xpose.msra.mxu0 0.0
    %601 = vmatprep.subr.mxu0 0.0
    %602 = vmatpush1.xpose.msra.mxu0 0.0
    %603 = vmatprep.subr.mxu0 0.0
    %604 = vmatpush1.xpose.msra.mxu0 0.0
    %605 = vmatprep.subr.mxu0 0.0
    %606 = vmatpush1.xpose.msra.mxu0 0.0
    %607 = vmatprep.subr.mxu0 0.0
    %608 = vmatpush1.xpose.msra.mxu0 0.0
    %609 = vmatprep.subr.mxu0 0.0
    %610 = vmatpush1.xpose.msra.mxu0 0.0
    %611 = vmatprep.subr.mxu0 0.0
    %612 = vmatpush1.xpose.msra.mxu0 0.0
    %613 = vmatprep.subr.mxu0 0.0
    %614 = vmatpush1.xpose.msra.mxu0 0.0
    %615 = vmatprep.subr.mxu0 0.0
    %616 = vmatpush1.xpose.msra.mxu0 0.0
    %617 = vmatprep.subr.mxu0 0.0
    %618 = vmatpush1.xpose.msra.mxu0 0.0
    %619 = vmatprep.subr.mxu0 0.0
    %620 = vmatpush1.xpose.msra.mxu0 0.0
    %621 = vmatprep.subr.mxu0 0.0
    %622 = vmatpush1.xpose.msra.mxu0 0.0
    %623 = vmatprep.subr.mxu0 0.0
    %624 = vmatpush1.xpose.msra.mxu0 0.0
    %625 = vmatprep.subr.mxu0 0.0
    %626 = vmatpush1.xpose.msra.mxu0 %v593
    %627 = vmatprep.subr.mxu0 0.0
    %628 = vmatpush2.xpose.msra.mxu0 0.0
    %629 = vmatprep.subr.mxu0 0.0
    %630 = vmatpush2.xpose.msra.mxu0 0.0
    %631 = vmatprep.subr.mxu0 0.0
    %632 = vmatpush2.xpose.msra.mxu0 0.0
    %633 = vmatprep.subr.mxu0 0.0
    %634 = vmatpush2.xpose.msra.mxu0 0.0
    %635 = vmatprep.subr.mxu0 0.0
    %636 = vmatpush2.xpose.msra.mxu0 0.0
    %637 = vmatprep.subr.mxu0 0.0
    %638 = vmatpush2.xpose.msra.mxu0 0.0
    %639 = vmatprep.subr.mxu0 0.0
    %640 = vmatpush2.xpose.msra.mxu0 0.0
    %641 = vmatprep.subr.mxu0 0.0
    %642 = vmatpush2.xpose.msra.mxu0 0.0
    %643 = vmatprep.subr.mxu0 0.0
    %644 = vmatpush2.xpose.msra.mxu0 0.0
    %645 = vmatprep.subr.mxu0 0.0
    %646 = vmatpush2.xpose.msra.mxu0 0.0
    %647 = vmatprep.subr.mxu0 0.0
    %648 = vmatpush2.xpose.msra.mxu0 0.0
    %649 = vmatprep.subr.mxu0 0.0
    %650 = vmatpush2.xpose.msra.mxu0 0.0
    %651 = vmatprep.subr.mxu0 0.0
    %652 = vmatpush2.xpose.msra.mxu0 0.0
    %653 = vmatprep.subr.mxu0 0.0
    %654 = vmatpush2.xpose.msra.mxu0 0.0
    %655 = vmatprep.subr.mxu0 0.0
    %656 = vmatpush2.xpose.msra.mxu0 0.0
    %657 = vmatprep.subr.mxu0 0.0
    %658 = vmatpush2.xpose.msra.mxu0 0.0
    %659 = vmatprep.mubr.f32.mxu0 0.0
    %660 = vmatmul.mubr.f32.gmra.mxu0 %v590
    %v661 = vpop.f32.mrf.mxu0
    %v662 = vadd.f32 %v588, %v661
    %v663 = vpop.f32.mrf.mxu0
    %664 = vdwg.mxu0
    %vm665 = vcmask 57344
    %666 = vst.msk [vmem:[#allocation8] sm:$0x1] %vm665, %v662
    // Predicated region
    $region70: #{tpu_custom_call.1} parent=1 // pred_check
      _
    $region71: #{tpu_custom_call.1} parent=1 // pred_check_branch
      %668 = sbr.rel (0) target = $region73
    $region72: #{tpu_custom_call.1} parent=1 // pred_region
      %s670 = ssub.s32 16, 16
      %671 = vsyncadd [#allocation5], %s670
      %s673 = sshll.u32 [#allocation8], 4
      %s674 = int_to_ptr.vmem [resolvable:$true] %s673
      %676 = dma.vmem_to_hbm [thread:$0]  %s674, 16, %s15, [#allocation5]
    $region73: #{tpu_custom_call.1} parent=1 // pred_fallthru
      _
    // Predicated region
    $region74: #{tpu_custom_call.1} parent=1 // pred_check
      _
    $region75: #{tpu_custom_call.1} parent=1 // pred_check_branch
      %678 = sbr.rel (0) target = $region77
    $region76: #{tpu_custom_call.1} parent=1 // pred_region
      %679 = dma.done [#allocation5], 16
    $region77: #{tpu_custom_call.1} parent=1 // pred_fallthru
      _
    %680 = vsyncpa [#allocation4], 1
    %681 = vsyncpa [#allocation7], 1
    %682 = vsyncpa [#allocation5], 1

</llo_original>
